<compile_context>
chip_gen: v6e
topology: v6e:2x2x1
jax: 0.10.0
libtpu: 0.0.40
codegen_flags: <defaults>
</compile_context>

<pallas_src>
import functools

import jax
import jax.numpy as jnp
from jax import lax
from jax.experimental import pallas as pl
from jax.experimental.pallas import tpu as pltpu


_PAD_W = 128                 # lane-aligned zero padding on the flat pixel axis
_MM_DTYPE = jnp.bfloat16     # MXU input dtype (accumulation stays float32)


def _round_up(x, m):
    return (x + m - 1) // m * m


# ----------------------------- in-kernel im2col ---------------------------- #
def _patch_rows(x_cp, H, W):
    """Transposed im2col rows for a 3x3 / stride-1 / pad-1 convolution.

    x_cp: (C, H*W) value — channels on sublanes, flattened pixels on lanes.
    Returns (9*C, H*W); row block t*C:(t+1)*C is the input shifted by tap t
    (tap order dy-major, dx-minor), with zero at the spatial borders.
    """
    C, HW = x_cp.shape
    z = jnp.zeros((C, _PAD_W), dtype=x_cp.dtype)
    xpad = jnp.concatenate([z, x_cp, z], axis=1)           # (C, HW + 2*_PAD_W)

    col = lax.broadcasted_iota(jnp.int32, (1, HW), 1)      # flat pixel index
    xpos = col % W
    not_left = xpos >= 1                                   # dx=-1 invalid at x==0
    not_right = xpos <= W - 2                              # dx=+1 invalid at x==W-1

    rows = []
    for dy in (-1, 0, 1):
        for dx in (-1, 0, 1):
            start = _PAD_W + dy * W + dx
            blk = xpad[:, start:start + HW]                # (C, HW)
            if dx == -1:
                blk = jnp.where(not_left, blk, 0.0)
            elif dx == 1:
                blk = jnp.where(not_right, blk, 0.0)
            # dy out-of-bounds rows land in the zero padding automatically.
            rows.append(blk)
    return jnp.concatenate(rows, axis=0)                   # (9*C, HW)


# ------------------------------ Pallas kernel ------------------------------ #
def _fused_backbone_kernel(x_ref, w1_ref, b1_ref, w2_ref, b2_ref, o_ref, *, H, W):
    """Fused [Conv3x3+BN+ReLU] x 2 for one image, CHW layout, pixels on lanes.

    x_ref:  (1, C1p, HW) f32    w1_ref: (C2, 9*C1p) bf16 (BN scale folded)
    b1_ref: (C2, 1)      f32    w2_ref: (C3, 9*C2)  bf16
    b2_ref: (C3, 1)      f32    o_ref:  (1, C3, HW) f32  (lane-dense)
    """
    x = x_ref[0]                                           # (C1p, HW)

    # Block 1: one MXU matmul (C2, 9*C1p) @ (9*C1p, HW), f32 epilogue.
    p1 = _patch_rows(x, H, W).astype(_MM_DTYPE)
    h = jnp.dot(w1_ref[...], p1, preferred_element_type=jnp.float32)
    h = jnp.maximum(h + b1_ref[...], 0.0)                  # (C2, HW) f32

    # Block 2: intermediate `h` never leaves VMEM.
    p2 = _patch_rows(h, H, W).astype(_MM_DTYPE)
    y = jnp.dot(w2_ref[...], p2, preferred_element_type=jnp.float32)
    y = jnp.maximum(y + b2_ref[...], 0.0)                  # (C3, HW) f32

    o_ref[0] = y.astype(o_ref.dtype)                       # lane-dense store


# ------------------------------- JAX wrapper -------------------------------- #
def fold_conv_bn(p, c_in_pad, eps=1e-5):
    """Fold eval-mode BatchNorm into the conv: return (w_mat, shift).

    w_mat: (C_out, 9*c_in_pad) in _MM_DTYPE, columns ordered tap-major /
           input-channel-minor (matches _patch_rows).  BN scale folded in.
    shift: (C_out, 1) float32.
    """
    w = p["w"]                                             # (C_out, C_in, 3, 3)
    c_out, c_in = w.shape[0], w.shape[1]
    inv_std = 1.0 / jnp.sqrt(p["run_var"] + eps)
    scale = p["gamma"] * inv_std
    shift = p["beta"] + (p["b"] - p["run_mean"]) * scale
    w_t = jnp.transpose(w, (0, 2, 3, 1))                   # (C_out, 3, 3, C_in)
    if c_in_pad > c_in:
        w_t = jnp.pad(w_t, ((0, 0), (0, 0), (0, 0), (0, c_in_pad - c_in)))
    w_mat = w_t.reshape(c_out, 9 * c_in_pad) * scale[:, None]
    return w_mat.astype(_MM_DTYPE), shift[:, None].astype(jnp.float32)


@jax.jit
def res_cutlayers_forward(x_nchw, params1, params2):
    """Fused forward of the layers kept by res_cutlayers(net, delete=3).
    Input and output are NCHW (PyTorch convention)."""
    N, C1, H, W = x_nchw.shape
    HW = H * W
    C2 = params1["w"].shape[0]
    C3 = params2["w"].shape[0]
    C1p = _round_up(C1, 8)

    # TODO(synk): mask the pixel tail / tile H*W with halos for shapes where
    # H*W is not a multiple of 128 or is too large for a single VMEM tile.
    assert HW % 128 == 0, "demo assumes lane-dense H*W (multiple of 128)"
    assert W + 1 <= _PAD_W, "image width too large for the fixed flat padding"
    assert C2 % 8 == 0, "block-1 output channels must be a multiple of 8"

    # NCHW -> (N, C, H*W): free reshape; pixels land on the lane axis.
    x = x_nchw.reshape(N, C1, HW)
    if C1p > C1:
        x = jnp.pad(x, ((0, 0), (0, C1p - C1), (0, 0)))

    w1, b1 = fold_conv_bn(params1, C1p)
    w2, b2 = fold_conv_bn(params2, C2)

    kernel = functools.partial(_fused_backbone_kernel, H=H, W=W)
    out = pl.pallas_call(
        kernel,
        out_shape=jax.ShapeDtypeStruct((N, C3, HW), jnp.float32),
        grid_spec=pltpu.PrefetchScalarGridSpec(
            num_scalar_prefetch=0,
            grid=(N,),                      # one image per step
            in_specs=[
                pl.BlockSpec((1, C1p, HW), lambda n: (n, 0, 0)),
                pl.BlockSpec((C2, 9 * C1p), lambda n: (0, 0)),   # invariant
                pl.BlockSpec((C2, 1), lambda n: (0, 0)),         # invariant
                pl.BlockSpec((C3, 9 * C2), lambda n: (0, 0)),    # invariant
                pl.BlockSpec((C3, 1), lambda n: (0, 0)),         # invariant
            ],
            out_specs=pl.BlockSpec((1, C3, HW), lambda n: (n, 0, 0)),
        ),
        compiler_params=pltpu.CompilerParams(
            dimension_semantics=("parallel",)),                  # 2-TC on v7x
    )(x, w1, b1, w2, b2)

    # (N, C3, H*W) -> NCHW is a free reshape (no transpose needed).
    return out.reshape(N, C3, H, W)


# ------------------------------ synthetic params ---------------------------- #
def make_block_params(key, c_in, c_out):
    """Deterministic Conv2d(c_in->c_out,3,pad=1) + BatchNorm2d(c_out) params."""
    k_w, k_b, k_g, k_be, k_m, k_v = jax.random.split(key, 6)
    w = jax.random.normal(k_w, (c_out, c_in, 3, 3), jnp.float32) * 0.1  # OIHW
    b = jax.random.normal(k_b, (c_out,), jnp.float32) * 0.05
    gamma = 1.0 + 0.1 * jax.random.normal(k_g, (c_out,), jnp.float32)
    beta = 0.05 * jax.random.normal(k_be, (c_out,), jnp.float32)
    run_mean = 0.05 * jax.random.normal(k_m, (c_out,), jnp.float32)
    run_var = 1.0 + 0.1 * jax.random.uniform(k_v, (c_out,), jnp.float32)
    return dict(w=w, b=b, gamma=gamma, beta=beta,
                run_mean=run_mean, run_var=run_var)


# ------------------------------ reference check ----------------------------- #
def reference_block(x_nchw, p, eps=1e-5):
    dn = lax.conv_dimension_numbers(x_nchw.shape, p["w"].shape,
                                    ("NCHW", "OIHW", "NCHW"))
    y = lax.conv_general_dilated(x_nchw, p["w"], (1, 1), "SAME",
                                 dimension_numbers=dn)
    inv_std = 1.0 / jnp.sqrt(p["run_var"] + eps)
    scale = p["gamma"] * inv_std
    shift = p["beta"] + (p["b"] - p["run_mean"]) * scale
    y = y * scale[None, :, None, None] + shift[None, :, None, None]
    return jnp.maximum(y, 0.0)


def reference_forward(x_nchw, p1, p2):
    return reference_block(reference_block(x_nchw, p1), p2)


# ----------------------------------- main ------------------------------------ #
if __name__ == "__main__":
    key = jax.random.PRNGKey(0)
    k_x, k_p1, k_p2 = jax.random.split(key, 3)

    N, C, H, W = 2, 4, 16, 16
    x = jax.random.normal(k_x, (N, C, H, W), jnp.float32)

    params1 = make_block_params(k_p1, c_in=4, c_out=8)
    params2 = make_block_params(k_p2, c_in=8, c_out=16)

    out = jax.block_until_ready(res_cutlayers_forward(x, params1, params2))
    ref = jax.block_until_ready(reference_forward(x, params1, params2))

    assert out.shape == (N, 16, H, W)
    # Tolerance accounts for bf16 MXU inputs (f32 accumulation/epilogue).
    assert jnp.allclose(out, ref, atol=5e-2, rtol=5e-2), "mismatch vs reference"

    print("KERNEL_OK")
</pallas_src>

<mosaic_0001>
module attributes {stable_mosaic.version = 11 : i64} {
  func.func @_fused_backbone_kernel(%arg0: i32, %arg1: memref<1x8x256xf32, #tpu.memory_space<vmem>>, %arg2: memref<8x72xbf16, #tpu.memory_space<vmem>>, %arg3: memref<8x1xf32, #tpu.memory_space<vmem>>, %arg4: memref<16x72xbf16, #tpu.memory_space<vmem>>, %arg5: memref<16x1xf32, #tpu.memory_space<vmem>>, %arg6: memref<1x16x256xf32, #tpu.memory_space<vmem>>) attributes {dimension_semantics = [#tpu.dimension_semantics<parallel>], iteration_bounds = array<i64: 2>, scalar_prefetch = 0 : i64, scratch_operands = 0 : i64, tpu.core_type = #tpu.core_type<tc>, window_params = [{transform_indices = @transform_0, window_bounds = array<i64: 1, 8, 256>}, {pipeline_mode = #tpu.pipeline_mode<synchronous>, transform_indices = @transform_1, window_bounds = array<i64: 8, 72>}, {pipeline_mode = #tpu.pipeline_mode<synchronous>, transform_indices = @transform_2, window_bounds = array<i64: 8, 1>}, {pipeline_mode = #tpu.pipeline_mode<synchronous>, transform_indices = @transform_3, window_bounds = array<i64: 16, 72>}, {pipeline_mode = #tpu.pipeline_mode<synchronous>, transform_indices = @transform_4, window_bounds = array<i64: 16, 1>}, {transform_indices = @transform_5, window_bounds = array<i64: 1, 16, 256>}]} {
    %c0 = arith.constant 0 : index
    %c0_0 = arith.constant 0 : index
    %c0_1 = arith.constant 0 : index
    %0 = vector.load %arg1[%c0, %c0_0, %c0_1] : memref<1x8x256xf32, #tpu.memory_space<vmem>>, vector<1x8x256xf32>
    %1 = vector.shape_cast %0 : vector<1x8x256xf32> to vector<8x256xf32>
    %cst = arith.constant 0.000000e+00 : f32
    %2 = vector.broadcast %cst : f32 to vector<8x128xf32>
    %3 = tpu.concatenate %2, %1, %2 in 1 : vector<8x128xf32>, vector<8x256xf32>, vector<8x128xf32> -> vector<8x512xf32>
    %4 = tpu.iota {dimensions = array<i32: 1>} : vector<1x256xi32>
    %c16_i32 = arith.constant 16 : i32
    %c0_i32 = arith.constant 0 : i32
    %5 = arith.cmpi eq, %c16_i32, %c0_i32 : i32
    %c1_i32 = arith.constant 1 : i32
    %6 = arith.select %5, %c1_i32, %c16_i32 : i32
    %7 = vector.broadcast %6 : i32 to vector<1x256xi32>
    %8 = arith.remsi %4, %7 : vector<1x256xi32>
    %c0_i32_2 = arith.constant 0 : i32
    %9 = vector.broadcast %c0_i32_2 : i32 to vector<1x256xi32>
    %10 = arith.cmpi ne, %8, %9 : vector<1x256xi32>
    %c0_i32_3 = arith.constant 0 : i32
    %11 = vector.broadcast %c0_i32_3 : i32 to vector<1x256xi32>
    %12 = arith.cmpi slt, %8, %11 : vector<1x256xi32>
    %c0_i32_4 = arith.constant 0 : i32
    %13 = arith.cmpi slt, %6, %c0_i32_4 : i32
    %14 = vector.broadcast %13 : i1 to vector<1x256xi1>
    %15 = vector.broadcast %14 : vector<1x256xi1> to vector<1x256xi1>
    %16 = arith.xori %12, %15 : vector<1x256xi1>
    %17 = arith.andi %16, %10 : vector<1x256xi1>
    %18 = vector.broadcast %6 : i32 to vector<1x256xi32>
    %19 = arith.addi %8, %18 : vector<1x256xi32>
    %20 = arith.select %17, %19, %8 : vector<1x256xi1>, vector<1x256xi32>
    %c1_i32_5 = arith.constant 1 : i32
    %21 = vector.broadcast %c1_i32_5 : i32 to vector<1x256xi32>
    %22 = arith.cmpi sge, %20, %21 : vector<1x256xi32>
    %c14_i32 = arith.constant 14 : i32
    %23 = vector.broadcast %c14_i32 : i32 to vector<1x256xi32>
    %24 = arith.cmpi sle, %20, %23 : vector<1x256xi32>
    %25 = vector.extract_strided_slice %3 {offsets = [0, 111], sizes = [8, 256], strides = [1, 1]} : vector<8x512xf32> to vector<8x256xf32>
    %cst_6 = arith.constant 0.000000e+00 : f32
    %26 = vector.shape_cast %22 : vector<1x256xi1> to vector<1x256xi1>
    %27 = vector.broadcast %26 : vector<1x256xi1> to vector<8x256xi1>
    %28 = vector.broadcast %cst_6 : f32 to vector<8x256xf32>
    %29 = arith.select %27, %25, %28 : vector<8x256xi1>, vector<8x256xf32>
    %30 = vector.extract_strided_slice %3 {offsets = [0, 112], sizes = [8, 256], strides = [1, 1]} : vector<8x512xf32> to vector<8x256xf32>
    %31 = vector.extract_strided_slice %3 {offsets = [0, 113], sizes = [8, 256], strides = [1, 1]} : vector<8x512xf32> to vector<8x256xf32>
    %cst_7 = arith.constant 0.000000e+00 : f32
    %32 = vector.shape_cast %24 : vector<1x256xi1> to vector<1x256xi1>
    %33 = vector.broadcast %32 : vector<1x256xi1> to vector<8x256xi1>
    %34 = vector.broadcast %cst_7 : f32 to vector<8x256xf32>
    %35 = arith.select %33, %31, %34 : vector<8x256xi1>, vector<8x256xf32>
    %36 = vector.extract_strided_slice %3 {offsets = [0, 127], sizes = [8, 256], strides = [1, 1]} : vector<8x512xf32> to vector<8x256xf32>
    %cst_8 = arith.constant 0.000000e+00 : f32
    %37 = vector.shape_cast %22 : vector<1x256xi1> to vector<1x256xi1>
    %38 = vector.broadcast %37 : vector<1x256xi1> to vector<8x256xi1>
    %39 = vector.broadcast %cst_8 : f32 to vector<8x256xf32>
    %40 = arith.select %38, %36, %39 : vector<8x256xi1>, vector<8x256xf32>
    %41 = vector.extract_strided_slice %3 {offsets = [0, 128], sizes = [8, 256], strides = [1, 1]} : vector<8x512xf32> to vector<8x256xf32>
    %42 = vector.extract_strided_slice %3 {offsets = [0, 129], sizes = [8, 256], strides = [1, 1]} : vector<8x512xf32> to vector<8x256xf32>
    %cst_9 = arith.constant 0.000000e+00 : f32
    %43 = vector.shape_cast %24 : vector<1x256xi1> to vector<1x256xi1>
    %44 = vector.broadcast %43 : vector<1x256xi1> to vector<8x256xi1>
    %45 = vector.broadcast %cst_9 : f32 to vector<8x256xf32>
    %46 = arith.select %44, %42, %45 : vector<8x256xi1>, vector<8x256xf32>
    %47 = vector.extract_strided_slice %3 {offsets = [0, 143], sizes = [8, 256], strides = [1, 1]} : vector<8x512xf32> to vector<8x256xf32>
    %cst_10 = arith.constant 0.000000e+00 : f32
    %48 = vector.shape_cast %22 : vector<1x256xi1> to vector<1x256xi1>
    %49 = vector.broadcast %48 : vector<1x256xi1> to vector<8x256xi1>
    %50 = vector.broadcast %cst_10 : f32 to vector<8x256xf32>
    %51 = arith.select %49, %47, %50 : vector<8x256xi1>, vector<8x256xf32>
    %52 = vector.extract_strided_slice %3 {offsets = [0, 144], sizes = [8, 256], strides = [1, 1]} : vector<8x512xf32> to vector<8x256xf32>
    %53 = vector.extract_strided_slice %3 {offsets = [0, 145], sizes = [8, 256], strides = [1, 1]} : vector<8x512xf32> to vector<8x256xf32>
    %cst_11 = arith.constant 0.000000e+00 : f32
    %54 = vector.shape_cast %24 : vector<1x256xi1> to vector<1x256xi1>
    %55 = vector.broadcast %54 : vector<1x256xi1> to vector<8x256xi1>
    %56 = vector.broadcast %cst_11 : f32 to vector<8x256xf32>
    %57 = arith.select %55, %53, %56 : vector<8x256xi1>, vector<8x256xf32>
    %58 = tpu.concatenate %29, %30, %35, %40, %41, %46, %51, %52, %57 in 0 : vector<8x256xf32>, vector<8x256xf32>, vector<8x256xf32>, vector<8x256xf32>, vector<8x256xf32>, vector<8x256xf32>, vector<8x256xf32>, vector<8x256xf32>, vector<8x256xf32> -> vector<72x256xf32>
    %59 = arith.truncf %58 : vector<72x256xf32> to vector<72x256xbf16>
    %c0_12 = arith.constant 0 : index
    %c0_13 = arith.constant 0 : index
    %60 = vector.load %arg2[%c0_12, %c0_13] : memref<8x72xbf16, #tpu.memory_space<vmem>>, vector<8x72xbf16>
    %cst_14 = arith.constant dense<0.000000e+00> : vector<8x256xf32>
    %61 = tpu.matmul %60, %59, %cst_14 {dimension_numbers = #tpu.dot_dimension_numbers<[1], [0], [0], [1], [0, 0, 1, 1], [], []>} : vector<8x72xbf16>, vector<72x256xbf16>, vector<8x256xf32> -> vector<8x256xf32>
    %c0_15 = arith.constant 0 : index
    %c0_16 = arith.constant 0 : index
    %62 = vector.load %arg3[%c0_15, %c0_16] : memref<8x1xf32, #tpu.memory_space<vmem>>, vector<8x1xf32>
    %63 = vector.broadcast %62 : vector<8x1xf32> to vector<8x256xf32>
    %64 = arith.addf %61, %63 : vector<8x256xf32>
    %cst_17 = arith.constant 0.000000e+00 : f32
    %65 = vector.broadcast %cst_17 : f32 to vector<8x256xf32>
    %66 = arith.maximumf %64, %65 : vector<8x256xf32>
    %cst_18 = arith.constant 0.000000e+00 : f32
    %67 = vector.broadcast %cst_18 : f32 to vector<8x128xf32>
    %68 = tpu.concatenate %67, %66, %67 in 1 : vector<8x128xf32>, vector<8x256xf32>, vector<8x128xf32> -> vector<8x512xf32>
    %69 = tpu.iota {dimensions = array<i32: 1>} : vector<1x256xi32>
    %c16_i32_19 = arith.constant 16 : i32
    %c0_i32_20 = arith.constant 0 : i32
    %70 = arith.cmpi eq, %c16_i32_19, %c0_i32_20 : i32
    %c1_i32_21 = arith.constant 1 : i32
    %71 = arith.select %70, %c1_i32_21, %c16_i32_19 : i32
    %72 = vector.broadcast %71 : i32 to vector<1x256xi32>
    %73 = arith.remsi %69, %72 : vector<1x256xi32>
    %c0_i32_22 = arith.constant 0 : i32
    %74 = vector.broadcast %c0_i32_22 : i32 to vector<1x256xi32>
    %75 = arith.cmpi ne, %73, %74 : vector<1x256xi32>
    %c0_i32_23 = arith.constant 0 : i32
    %76 = vector.broadcast %c0_i32_23 : i32 to vector<1x256xi32>
    %77 = arith.cmpi slt, %73, %76 : vector<1x256xi32>
    %c0_i32_24 = arith.constant 0 : i32
    %78 = arith.cmpi slt, %71, %c0_i32_24 : i32
    %79 = vector.broadcast %78 : i1 to vector<1x256xi1>
    %80 = vector.broadcast %79 : vector<1x256xi1> to vector<1x256xi1>
    %81 = arith.xori %77, %80 : vector<1x256xi1>
    %82 = arith.andi %81, %75 : vector<1x256xi1>
    %83 = vector.broadcast %71 : i32 to vector<1x256xi32>
    %84 = arith.addi %73, %83 : vector<1x256xi32>
    %85 = arith.select %82, %84, %73 : vector<1x256xi1>, vector<1x256xi32>
    %c1_i32_25 = arith.constant 1 : i32
    %86 = vector.broadcast %c1_i32_25 : i32 to vector<1x256xi32>
    %87 = arith.cmpi sge, %85, %86 : vector<1x256xi32>
    %c14_i32_26 = arith.constant 14 : i32
    %88 = vector.broadcast %c14_i32_26 : i32 to vector<1x256xi32>
    %89 = arith.cmpi sle, %85, %88 : vector<1x256xi32>
    %90 = vector.extract_strided_slice %68 {offsets = [0, 111], sizes = [8, 256], strides = [1, 1]} : vector<8x512xf32> to vector<8x256xf32>
    %cst_27 = arith.constant 0.000000e+00 : f32
    %91 = vector.shape_cast %87 : vector<1x256xi1> to vector<1x256xi1>
    %92 = vector.broadcast %91 : vector<1x256xi1> to vector<8x256xi1>
    %93 = vector.broadcast %cst_27 : f32 to vector<8x256xf32>
    %94 = arith.select %92, %90, %93 : vector<8x256xi1>, vector<8x256xf32>
    %95 = vector.extract_strided_slice %68 {offsets = [0, 112], sizes = [8, 256], strides = [1, 1]} : vector<8x512xf32> to vector<8x256xf32>
    %96 = vector.extract_strided_slice %68 {offsets = [0, 113], sizes = [8, 256], strides = [1, 1]} : vector<8x512xf32> to vector<8x256xf32>
    %cst_28 = arith.constant 0.000000e+00 : f32
    %97 = vector.shape_cast %89 : vector<1x256xi1> to vector<1x256xi1>
    %98 = vector.broadcast %97 : vector<1x256xi1> to vector<8x256xi1>
    %99 = vector.broadcast %cst_28 : f32 to vector<8x256xf32>
    %100 = arith.select %98, %96, %99 : vector<8x256xi1>, vector<8x256xf32>
    %101 = vector.extract_strided_slice %68 {offsets = [0, 127], sizes = [8, 256], strides = [1, 1]} : vector<8x512xf32> to vector<8x256xf32>
    %cst_29 = arith.constant 0.000000e+00 : f32
    %102 = vector.shape_cast %87 : vector<1x256xi1> to vector<1x256xi1>
    %103 = vector.broadcast %102 : vector<1x256xi1> to vector<8x256xi1>
    %104 = vector.broadcast %cst_29 : f32 to vector<8x256xf32>
    %105 = arith.select %103, %101, %104 : vector<8x256xi1>, vector<8x256xf32>
    %106 = vector.extract_strided_slice %68 {offsets = [0, 128], sizes = [8, 256], strides = [1, 1]} : vector<8x512xf32> to vector<8x256xf32>
    %107 = vector.extract_strided_slice %68 {offsets = [0, 129], sizes = [8, 256], strides = [1, 1]} : vector<8x512xf32> to vector<8x256xf32>
    %cst_30 = arith.constant 0.000000e+00 : f32
    %108 = vector.shape_cast %89 : vector<1x256xi1> to vector<1x256xi1>
    %109 = vector.broadcast %108 : vector<1x256xi1> to vector<8x256xi1>
    %110 = vector.broadcast %cst_30 : f32 to vector<8x256xf32>
    %111 = arith.select %109, %107, %110 : vector<8x256xi1>, vector<8x256xf32>
    %112 = vector.extract_strided_slice %68 {offsets = [0, 143], sizes = [8, 256], strides = [1, 1]} : vector<8x512xf32> to vector<8x256xf32>
    %cst_31 = arith.constant 0.000000e+00 : f32
    %113 = vector.shape_cast %87 : vector<1x256xi1> to vector<1x256xi1>
    %114 = vector.broadcast %113 : vector<1x256xi1> to vector<8x256xi1>
    %115 = vector.broadcast %cst_31 : f32 to vector<8x256xf32>
    %116 = arith.select %114, %112, %115 : vector<8x256xi1>, vector<8x256xf32>
    %117 = vector.extract_strided_slice %68 {offsets = [0, 144], sizes = [8, 256], strides = [1, 1]} : vector<8x512xf32> to vector<8x256xf32>
    %118 = vector.extract_strided_slice %68 {offsets = [0, 145], sizes = [8, 256], strides = [1, 1]} : vector<8x512xf32> to vector<8x256xf32>
    %cst_32 = arith.constant 0.000000e+00 : f32
    %119 = vector.shape_cast %89 : vector<1x256xi1> to vector<1x256xi1>
    %120 = vector.broadcast %119 : vector<1x256xi1> to vector<8x256xi1>
    %121 = vector.broadcast %cst_32 : f32 to vector<8x256xf32>
    %122 = arith.select %120, %118, %121 : vector<8x256xi1>, vector<8x256xf32>
    %123 = tpu.concatenate %94, %95, %100, %105, %106, %111, %116, %117, %122 in 0 : vector<8x256xf32>, vector<8x256xf32>, vector<8x256xf32>, vector<8x256xf32>, vector<8x256xf32>, vector<8x256xf32>, vector<8x256xf32>, vector<8x256xf32>, vector<8x256xf32> -> vector<72x256xf32>
    %124 = arith.truncf %123 : vector<72x256xf32> to vector<72x256xbf16>
    %c0_33 = arith.constant 0 : index
    %c0_34 = arith.constant 0 : index
    %125 = vector.load %arg4[%c0_33, %c0_34] : memref<16x72xbf16, #tpu.memory_space<vmem>>, vector<16x72xbf16>
    %cst_35 = arith.constant dense<0.000000e+00> : vector<16x256xf32>
    %126 = tpu.matmul %125, %124, %cst_35 {dimension_numbers = #tpu.dot_dimension_numbers<[1], [0], [0], [1], [0, 0, 1, 1], [], []>} : vector<16x72xbf16>, vector<72x256xbf16>, vector<16x256xf32> -> vector<16x256xf32>
    %c0_36 = arith.constant 0 : index
    %c0_37 = arith.constant 0 : index
    %127 = vector.load %arg5[%c0_36, %c0_37] : memref<16x1xf32, #tpu.memory_space<vmem>>, vector<16x1xf32>
    %128 = vector.broadcast %127 : vector<16x1xf32> to vector<16x256xf32>
    %129 = arith.addf %126, %128 : vector<16x256xf32>
    %cst_38 = arith.constant 0.000000e+00 : f32
    %130 = vector.broadcast %cst_38 : f32 to vector<16x256xf32>
    %131 = arith.maximumf %129, %130 : vector<16x256xf32>
    %c0_39 = arith.constant 0 : index
    %c0_40 = arith.constant 0 : index
    %c0_41 = arith.constant 0 : index
    %132 = vector.load %arg6[%c0_39, %c0_40, %c0_41] : memref<1x16x256xf32, #tpu.memory_space<vmem>>, vector<1x16x256xf32>
    %133 = vector.shape_cast %132 : vector<1x16x256xf32> to vector<16x256xf32>
    %134 = vector.shape_cast %131 : vector<16x256xf32> to vector<1x16x256xf32>
    tpu.vector_store %arg6[%c0_39, %c0_40, %c0_41], %134 {strides = array<i32>} : memref<1x16x256xf32, #tpu.memory_space<vmem>>, vector<1x16x256xf32>,
    return
  }
  func.func @transform_0(%arg0: i32) -> (i32, i32, i32) {
    %c0_i32 = arith.constant 0 : i32
    %c0_i32_0 = arith.constant 0 : i32
    %c0_i32_1 = arith.constant 0 : i32
    return %arg0, %c0_i32, %c0_i32_0 : i32, i32, i32
  }
  func.func @transform_1(%arg0: i32) -> (i32, i32) {
    %c0_i32 = arith.constant 0 : i32
    %c0_i32_0 = arith.constant 0 : i32
    %c0_i32_1 = arith.constant 0 : i32
    return %c0_i32, %c0_i32_0 : i32, i32
  }
  func.func @transform_2(%arg0: i32) -> (i32, i32) {
    %c0_i32 = arith.constant 0 : i32
    %c0_i32_0 = arith.constant 0 : i32
    %c0_i32_1 = arith.constant 0 : i32
    return %c0_i32, %c0_i32_0 : i32, i32
  }
  func.func @transform_3(%arg0: i32) -> (i32, i32) {
    %c0_i32 = arith.constant 0 : i32
    %c0_i32_0 = arith.constant 0 : i32
    %c0_i32_1 = arith.constant 0 : i32
    return %c0_i32, %c0_i32_0 : i32, i32
  }
  func.func @transform_4(%arg0: i32) -> (i32, i32) {
    %c0_i32 = arith.constant 0 : i32
    %c0_i32_0 = arith.constant 0 : i32
    %c0_i32_1 = arith.constant 0 : i32
    return %c0_i32, %c0_i32_0 : i32, i32
  }
  func.func @transform_5(%arg0: i32) -> (i32, i32, i32) {
    %c0_i32 = arith.constant 0 : i32
    %c0_i32_0 = arith.constant 0 : i32
    %c0_i32_1 = arith.constant 0 : i32
    return %arg0, %c0_i32, %c0_i32_0 : i32, i32, i32
  }
}

</mosaic_0001>

<llo_original>
// kernel: res_cutlayers_forward.1
$region0: #{res_cutlayers_forward.1}
  #allocation0 [shape = 'u32[]', space=smem, size = 0x4, offset = 0x4, fixed_abs, tag = 'smem constant byte address 0x4 - core index']
  #allocation1 [shape = 'u32[144,128]{1,0:T(1,128)}', space=vmem, size = 0x12000, scoped, tag = 'internal scratch']
  %s0 = inlined_call_operand.vmem [shape: f32[2,8,256], index: 0, kind: input, shape index: {}]
  %s1 = inlined_call_operand.vmem [shape: bf16[8,72], index: 1, kind: input, shape index: {}]
  %s2 = inlined_call_operand.vmem [shape: f32[8,1], index: 2, kind: input, shape index: {}]
  %s3 = inlined_call_operand.vmem [shape: bf16[16,72], index: 3, kind: input, shape index: {}]
  %s4 = inlined_call_operand.vmem [shape: f32[16,1], index: 4, kind: input, shape index: {}]
  %s5 = inlined_call_operand.vmem [shape: f32[2,16,256], index: 5, kind: output, shape index: {}]
  %s6 = sld [smem:[#allocation0]]
  $region53: #{res_cutlayers_forward.1} parent=0
    _
  %s8 = ssub.s32 1, %s6
  %s9 = scalar_select 0, %s8, %s6
  loop: start=0, step=1, limit=4
  $region2: #{res_cutlayers_forward.1} parent=0 // loop_pre_header
    _
  $region3: #{res_cutlayers_forward.1} parent=0 // loop_header
    %s11 = sphi 0, %s15
    %p12 = scmp.ge.s32.totalorder %s11, 4
    %s21 = sphi 0, %s23
    %s24 = sphi 0, %s21
    %s25 = sphi 0, %s24
    %s41 = sphi 0, %s25
    %s45 = sphi 0, %s45
    %s47 = sphi 0, %s45
    %s48 = sphi 0, %s47
    %s62 = sphi 0, %s48
    %s66 = sphi 0, %s66
    %s68 = sphi 0, %s66
    %s69 = sphi 0, %s68
    %s83 = sphi 0, %s69
    %s87 = sphi 0, %s87
    %s89 = sphi 0, %s87
    %s90 = sphi 0, %s89
    %s104 = sphi 0, %s90
    %s108 = sphi 0, %s108
    %s110 = sphi 0, %s108
    %s111 = sphi 0, %s110
    %s125 = sphi 0, %s111
    %s131 = sphi 0, %s133
    %s134 = sphi 0, %s131
    %s135 = sphi 0, %s134
    %s151 = sphi 0, %s135
  $region4: #{res_cutlayers_forward.1} parent=0 // loop_header_branch
    %14 = sbr.rel (%p12) target = $region8
  $region5: #{res_cutlayers_forward.1} parent=0 // loop_body
    %s16 = ssub.s32 %s11, 1
    %s17 = ssub.s32 %s11, 2
    %s18 = sadd.s32 %s11, 1
    %s19 = ssub.s32 %s11, %s18
    %p20 = scmp.eq.s32.totalorder %s19, 0
    %s22 = sadd.s32 %s21, 1
    %s23 = scalar_select %p20, %s21, %s22
    %p26 = pneg %p20
    %p27 = scmp.eq.s32.totalorder %s11, 1
    %p28 = por %p26, %p27
    %p29 = scmp.ne.s32.totalorder %s21, %s24
    %p30 = scmp.eq.s32.totalorder %s11, 0
    %p31 = por %p29, %p30
    %p32 = scmp.ne.s32.totalorder %s21, %s24
    %p33 = scmp.eq.s32.totalorder %s16, 1
    %p34 = por %p32, %p33
    %p35 = scmp.ne.s32.totalorder %s24, %s25
    %p36 = scmp.eq.s32.totalorder %s16, 0
    %p37 = por %p35, %p36
    %p38 = scmp.ne.s32.totalorder %s24, %s25
    %p39 = scmp.eq.s32.totalorder %s17, 1
    %p40 = por %p38, %p39
    %p42 = scmp.ne.s32.totalorder %s25, %s41
    %p43 = scmp.eq.s32.totalorder %s17, 0
    %p44 = por %p42, %p43
    %s46 = sadd.s32 %s45, 1
    %p49 = scmp.eq.s32.totalorder %s11, 1
    %p50 = scmp.ne.s32.totalorder %s45, %s47
    %p51 = scmp.eq.s32.totalorder %s11, 0
    %p52 = por %p50, %p51
    %p53 = scmp.ne.s32.totalorder %s45, %s47
    %p54 = scmp.eq.s32.totalorder %s16, 1
    %p55 = por %p53, %p54
    %p56 = scmp.ne.s32.totalorder %s47, %s48
    %p57 = scmp.eq.s32.totalorder %s16, 0
    %p58 = por %p56, %p57
    %p59 = scmp.ne.s32.totalorder %s47, %s48
    %p60 = scmp.eq.s32.totalorder %s17, 1
    %p61 = por %p59, %p60
    %p63 = scmp.ne.s32.totalorder %s48, %s62
    %p64 = scmp.eq.s32.totalorder %s17, 0
    %p65 = por %p63, %p64
    %s67 = sadd.s32 %s66, 1
    %p70 = scmp.eq.s32.totalorder %s11, 1
    %p71 = scmp.ne.s32.totalorder %s66, %s68
    %p72 = scmp.eq.s32.totalorder %s11, 0
    %p73 = por %p71, %p72
    %p74 = scmp.ne.s32.totalorder %s66, %s68
    %p75 = scmp.eq.s32.totalorder %s16, 1
    %p76 = por %p74, %p75
    %p77 = scmp.ne.s32.totalorder %s68, %s69
    %p78 = scmp.eq.s32.totalorder %s16, 0
    %p79 = por %p77, %p78
    %p80 = scmp.ne.s32.totalorder %s68, %s69
    %p81 = scmp.eq.s32.totalorder %s17, 1
    %p82 = por %p80, %p81
    %p84 = scmp.ne.s32.totalorder %s69, %s83
    %p85 = scmp.eq.s32.totalorder %s17, 0
    %p86 = por %p84, %p85
    %s88 = sadd.s32 %s87, 1
    %p91 = scmp.eq.s32.totalorder %s11, 1
    %p92 = scmp.ne.s32.totalorder %s87, %s89
    %p93 = scmp.eq.s32.totalorder %s11, 0
    %p94 = por %p92, %p93
    %p95 = scmp.ne.s32.totalorder %s87, %s89
    %p96 = scmp.eq.s32.totalorder %s16, 1
    %p97 = por %p95, %p96
    %p98 = scmp.ne.s32.totalorder %s89, %s90
    %p99 = scmp.eq.s32.totalorder %s16, 0
    %p100 = por %p98, %p99
    %p101 = scmp.ne.s32.totalorder %s89, %s90
    %p102 = scmp.eq.s32.totalorder %s17, 1
    %p103 = por %p101, %p102
    %p105 = scmp.ne.s32.totalorder %s90, %s104
    %p106 = scmp.eq.s32.totalorder %s17, 0
    %p107 = por %p105, %p106
    %s109 = sadd.s32 %s108, 1
    %p112 = scmp.eq.s32.totalorder %s11, 1
    %p113 = scmp.ne.s32.totalorder %s108, %s110
    %p114 = scmp.eq.s32.totalorder %s11, 0
    %p115 = por %p113, %p114
    %p116 = scmp.ne.s32.totalorder %s108, %s110
    %p117 = scmp.eq.s32.totalorder %s16, 1
    %p118 = por %p116, %p117
    %p119 = scmp.ne.s32.totalorder %s110, %s111
    %p120 = scmp.eq.s32.totalorder %s16, 0
    %p121 = por %p119, %p120
    %p122 = scmp.ne.s32.totalorder %s110, %s111
    %p123 = scmp.eq.s32.totalorder %s17, 1
    %p124 = por %p122, %p123
    %p126 = scmp.ne.s32.totalorder %s111, %s125
    %p127 = scmp.eq.s32.totalorder %s17, 0
    %p128 = por %p126, %p127
    %s129 = ssub.s32 %s11, %s18
    %p130 = scmp.eq.s32.totalorder %s129, 0
    %s132 = sadd.s32 %s131, 1
    %s133 = scalar_select %p130, %s131, %s132
    %p136 = pneg %p130
    %p137 = scmp.eq.s32.totalorder %s11, 1
    %p138 = por %p136, %p137
    %p139 = scmp.ne.s32.totalorder %s131, %s134
    %p140 = scmp.eq.s32.totalorder %s11, 0
    %p141 = por %p139, %p140
    %p142 = scmp.ne.s32.totalorder %s131, %s134
    %p143 = scmp.eq.s32.totalorder %s16, 1
    %p144 = por %p142, %p143
    %p145 = scmp.ne.s32.totalorder %s134, %s135
    %p146 = scmp.eq.s32.totalorder %s16, 0
    %p147 = por %p145, %p146
    %p148 = scmp.ne.s32.totalorder %s134, %s135
    %p149 = scmp.eq.s32.totalorder %s17, 1
    %p150 = por %p148, %p149
    %p152 = scmp.ne.s32.totalorder %s135, %s151
    %p153 = scmp.eq.s32.totalorder %s17, 0
    %p154 = por %p152, %p153
    %p155 = scmp.le.s32.totalorder 1, %s11
    %p156 = scmp.lt.s32.totalorder %s11, 3
    %p157 = pnand %p155, %p156
    %p158 = pneg %p157
    // Predicated region
    $region9: #{res_cutlayers_forward.1} parent=5 // pred_check
      _
    $region10: #{res_cutlayers_forward.1} parent=5 // pred_check_branch
      %160 = sbr.rel (%p157) target = $region12
    $region11: #{res_cutlayers_forward.1} parent=5 // pred_region
      %s161 = ssub.s32 %s11, 1
      // Predicated region
      $region13: #{res_cutlayers_forward.1} parent=11 // pred_check
        %p162 = pneg %p58
      $region14: #{res_cutlayers_forward.1} parent=11 // pred_check_branch
        %164 = sbr.rel (%p162) target = $region16
      $region15: #{res_cutlayers_forward.1} parent=11 // pred_region
        _
      $region16: #{res_cutlayers_forward.1} parent=11 // pred_fallthru
        _
      // Predicated region
      $region17: #{res_cutlayers_forward.1} parent=11 // pred_check
        %p165 = pneg %p79
      $region18: #{res_cutlayers_forward.1} parent=11 // pred_check_branch
        %167 = sbr.rel (%p165) target = $region20
      $region19: #{res_cutlayers_forward.1} parent=11 // pred_region
        _
      $region20: #{res_cutlayers_forward.1} parent=11 // pred_fallthru
        _
      // Predicated region
      $region21: #{res_cutlayers_forward.1} parent=11 // pred_check
        %p168 = pneg %p100
      $region22: #{res_cutlayers_forward.1} parent=11 // pred_check_branch
        %170 = sbr.rel (%p168) target = $region24
      $region23: #{res_cutlayers_forward.1} parent=11 // pred_region
        _
      $region24: #{res_cutlayers_forward.1} parent=11 // pred_fallthru
        _
      // Predicated region
      $region25: #{res_cutlayers_forward.1} parent=11 // pred_check
        %p171 = pneg %p121
      $region26: #{res_cutlayers_forward.1} parent=11 // pred_check_branch
        %173 = sbr.rel (%p171) target = $region28
      $region27: #{res_cutlayers_forward.1} parent=11 // pred_region
        _
      $region28: #{res_cutlayers_forward.1} parent=11 // pred_fallthru
        _
    $region12: #{res_cutlayers_forward.1} parent=5 // pred_fallthru
      _
    %p174 = scmp.lt.s32.totalorder %s11, 2
    // Predicated region
    $region29: #{res_cutlayers_forward.1} parent=5 // pred_check
      %p175 = pneg %p174
    $region30: #{res_cutlayers_forward.1} parent=5 // pred_check_branch
      %177 = sbr.rel (%p175) target = $region32
    $region31: #{res_cutlayers_forward.1} parent=5 // pred_region
      // Predicated region
      $region33: #{res_cutlayers_forward.1} parent=31 // pred_check
        %p178 = pneg %p31
      $region34: #{res_cutlayers_forward.1} parent=31 // pred_check_branch
        %180 = sbr.rel (%p178) target = $region36
      $region35: #{res_cutlayers_forward.1} parent=31 // pred_region
        %p181 = scmp.lt.s32.totalorder %s11, 1
        %s182 = scalar_select %p181, %s11, 1
        %s183 = smul.addr %s182, 2
        %s184 = smul.addr %s183, 8
        %s185 = scalar_lea.vmem %s0, %s184
      $region36: #{res_cutlayers_forward.1} parent=31 // pred_fallthru
        _
    $region32: #{res_cutlayers_forward.1} parent=5 // pred_fallthru
      _
    %p186 = scmp.le.s32.totalorder 1, %s11
    %p187 = scmp.lt.s32.totalorder %s11, 3
    %p188 = pnand %p186, %p187
    %p189 = pneg %p188
    // Predicated region
    $region37: #{res_cutlayers_forward.1} parent=5 // pred_check
      _
    $region38: #{res_cutlayers_forward.1} parent=5 // pred_check_branch
      %191 = sbr.rel (%p188) target = $region40
    $region39: #{res_cutlayers_forward.1} parent=5 // pred_region
      %s192 = ssub.s32 %s11, 1
      %p193 = scmp.lt.s32.totalorder %s16, 1
      %s194 = scalar_select %p193, %s16, 1
      %s195 = smul.addr %s194, 2
      %s196 = smul.addr %s195, 8
      %s197 = scalar_lea.vmem %s0, %s196
      %p198 = pneg %p37
      %p199 = pneg %p34
      %p200 = pneg %p58
      %p201 = pneg %p55
      %p202 = pneg %p79
      %p203 = pneg %p76
      %p204 = pneg %p100
      %p205 = pneg %p97
      %p206 = pneg %p121
      %p207 = pneg %p118
      %p208 = pneg %p147
      %p209 = pneg %p144
      %p210 = scmp.lt.s32.totalorder %s16, 1
      %s211 = scalar_select %p210, %s16, 1
      %s212 = smul.addr %s211, 4
      %s213 = smul.addr %s212, 8
      %s214 = scalar_lea.vmem %s5, %s213
      %p215 = scmp.lt.s32.totalorder %s16, 1
      %s216 = scalar_select %p215, %s16, 1
      %s217 = smul.addr %s216, 2
      %s218 = smul.addr %s217, 8
      %s219 = scalar_lea.vmem %s0, %s218
      %p220 = scmp.lt.s32.totalorder %s16, 1
      %s221 = scalar_select %p220, %s16, 1
      %s222 = smul.addr %s221, 4
      %s223 = smul.addr %s222, 8
      %s224 = scalar_lea.vmem %s5, %s223
      %v226 = vld [vmem:[%s219] sm:$0xff]
      %v227 = vld [vmem:[%s219 + $0x8] sm:$0xff]
      %v228 = vlaneseq
      %v229 = vand.u32 %v228, 127
      %v230 = vadd.s32 %v229, 128
      %vm231 = vcmp.lt.s32.totalorder %v229, 0
      %v232 = vsub.s32 0, %v229
      %v233 = vsel %vm231, %v232, %v229
      %v234 = vshrl.u32 %v233, 4
      %v235 = vand.u32 %v233, 15
      %v236 = vsub.s32 0, %v235
      %v237 = vsel %vm231, %v236, %v235
      %vm238 = vcmp.lt.s32.totalorder %v230, 0
      %v239 = vsub.s32 0, %v230
      %v240 = vsel %vm238, %v239, %v230
      %v241 = vshrl.u32 %v240, 4
      %v242 = vand.u32 %v240, 15
      %v243 = vsub.s32 0, %v242
      %v244 = vsel %vm238, %v243, %v242
      %vm245 = vcmp.ne.s32.totalorder %v237, 0
      %vm246 = vcmp.ne.s32.totalorder %v244, 0
      %vm247 = vcmp.lt.s32.totalorder %v237, 0
      %vm248 = vcmp.lt.s32.totalorder %v244, 0
      %vm249 = vmand %vm247, %vm245
      %vm250 = vmand %vm248, %vm246
      %v251 = vadd.s32 %v237, 16
      %v252 = vadd.s32 %v244, 16
      %v253 = vsel %vm249, %v251, %v237
      %v254 = vsel %vm250, %v252, %v244
      %vm255 = vcmp.ge.s32.totalorder %v253, 1
      %vm256 = vcmp.ge.s32.totalorder %v254, 1
      %vm257 = vcmp.le.s32.totalorder %v253, 14
      %vm258 = vcmp.le.s32.totalorder %v254, 14
      %v259 = vsel %vm255, 1, 0
      %v260 = vsel %vm256, 1, 0
      %vm261 = vcmp.eq.s32.totalorder %v259, 1
      %vm262 = vcmp.eq.s32.totalorder %v260, 1
      %266 = vrot.lane.b32.xlu0 0.0, 17
      %v267 = vpop.permute.xlu0 %266
      %268 = vrot.lane.b32.xlu0 %v226, 17
      %v269 = vpop.permute.xlu0 %268
      %270 = vrot.lane.b32.xlu0 %v227, 17
      %v271 = vpop.permute.xlu0 %270
      %vm272 = vcmask 138240
      %v273 = vsel %vm272, %v267, %v269
      %v274 = vsel %vm272, %v269, %v271
      %v277 = vsel %vm261, %v273, 0.0
      %v278 = vsel %vm262, %v274, 0.0
      %v279 = vsel %vm257, 1, 0
      %v280 = vsel %vm258, 1, 0
      %vm281 = vcmp.eq.s32.totalorder %v279, 1
      %vm282 = vcmp.eq.s32.totalorder %v280, 1
      %283 = vrot.lane.b32.xlu0 0.0, 15
      %v284 = vpop.permute.xlu0 %283
      %285 = vrot.lane.b32.xlu0 %v226, 15
      %v286 = vpop.permute.xlu0 %285
      %287 = vrot.lane.b32.xlu0 %v227, 15
      %v288 = vpop.permute.xlu0 %287
      %vm289 = vcmask 121856
      %v290 = vsel %vm289, %v284, %v286
      %v291 = vsel %vm289, %v286, %v288
      %v294 = vsel %vm281, %v290, 0.0
      %v295 = vsel %vm282, %v291, 0.0
      %296 = vrot.lane.b32.xlu0 0.0, 1
      %v297 = vpop.permute.xlu0 %296
      %298 = vrot.lane.b32.xlu0 %v226, 1
      %v299 = vpop.permute.xlu0 %298
      %300 = vrot.lane.b32.xlu0 %v227, 1
      %v301 = vpop.permute.xlu0 %300
      %vm302 = vcmask 7168
      %v303 = vsel %vm302, %v297, %v299
      %v304 = vsel %vm302, %v299, %v301
      %v307 = vsel %vm261, %v303, 0.0
      %v308 = vsel %vm262, %v304, 0.0
      %309 = vrot.lane.b32.xlu0 %v226, 127
      %v310 = vpop.permute.xlu0 %309
      %311 = vrot.lane.b32.xlu0 %v227, 127
      %v312 = vpop.permute.xlu0 %311
      %313 = vrot.lane.b32.xlu0 0.0, 127
      %v314 = vpop.permute.xlu0 %313
      %vm315 = vcmask 1039360
      %v316 = vsel %vm315, %v310, %v312
      %v317 = vsel %vm315, %v312, %v314
      %v320 = vsel %vm281, %v316, 0.0
      %v321 = vsel %vm282, %v317, 0.0
      %322 = vrot.lane.b32.xlu0 %v226, 113
      %v323 = vpop.permute.xlu0 %322
      %324 = vrot.lane.b32.xlu0 %v227, 113
      %v325 = vpop.permute.xlu0 %324
      %326 = vrot.lane.b32.xlu0 0.0, 113
      %v327 = vpop.permute.xlu0 %326
      %vm328 = vcmask 924672
      %v329 = vsel %vm328, %v323, %v325
      %v330 = vsel %vm328, %v325, %v327
      %v333 = vsel %vm261, %v329, 0.0
      %v334 = vsel %vm262, %v330, 0.0
      %335 = vrot.lane.b32.xlu0 %v226, 111
      %v336 = vpop.permute.xlu0 %335
      %337 = vrot.lane.b32.xlu0 %v227, 111
      %v338 = vpop.permute.xlu0 %337
      %339 = vrot.lane.b32.xlu0 0.0, 111
      %v340 = vpop.permute.xlu0 %339
      %vm341 = vcmask 908288
      %v342 = vsel %vm341, %v336, %v338
      %v343 = vsel %vm341, %v338, %v340
      %v346 = vsel %vm281, %v342, 0.0
      %v347 = vsel %vm282, %v343, 0.0
      %348 = vrot.lane.b32.xlu0 0.0, 16
      %v349 = vpop.permute.xlu0 %348
      %350 = vrot.lane.b32.xlu0 %v226, 16
      %v351 = vpop.permute.xlu0 %350
      %352 = vrot.lane.b32.xlu0 %v227, 16
      %v353 = vpop.permute.xlu0 %352
      %vm354 = vcmask 130048
      %v355 = vsel %vm354, %v349, %v351
      %v356 = vsel %vm354, %v351, %v353
      %359 = vrot.lane.b32.xlu0 %v226, 112
      %v360 = vpop.permute.xlu0 %359
      %361 = vrot.lane.b32.xlu0 %v227, 112
      %v362 = vpop.permute.xlu0 %361
      %363 = vrot.lane.b32.xlu0 0.0, 112
      %v364 = vpop.permute.xlu0 %363
      %vm365 = vcmask 916480
      %v366 = vsel %vm365, %v360, %v362
      %v367 = vsel %vm365, %v362, %v364
      %v370 = vpack.c.bf16 %v355, %v277
      %v371 = vpack.c.bf16 %v356, %v278
      %v372 = vpack.c.bf16 %v307, %v294
      %v373 = vpack.c.bf16 %v308, %v295
      %v374 = vpack.c.bf16 %v320, %v226
      %v375 = vpack.c.bf16 %v321, %v227
      %v376 = vpack.c.bf16 %v366, %v333
      %v377 = vpack.c.bf16 %v367, %v334
      %v378 = vpack.c.bf16 %v346, %v346
      %v379 = vpack.c.bf16 %v347, %v347
      %v380 = vld [vmem:[%s1] sm:$0xf]
      %v381 = vld [vmem:[%s2] sm:$0xff]
      %383 = vset.pattern.permute.xlu0 0
      %384 = vperm.xlu0 %383, %v381
      %v385 = vpop.permute.xlu0 %384
      %vm387 = vcmask 588800
      %v389 = vsel %vm387, %v380, 0
      %vm391 = vcmask 1043456
      %v393 = vsel %vm391, %v378, 0
      %v396 = vsel %vm391, %v379, 0
      %398 = vmatprep.subr.bf16.mxu0 0
      %399 = vmatpush1.bf16.msra.mxu0 0
      %400 = vmatprep.subr.bf16.mxu0 0
      %401 = vmatpush1.bf16.msra.mxu0 0
      %402 = vmatprep.subr.bf16.mxu0 0
      %403 = vmatpush1.bf16.msra.mxu0 0
      %404 = vmatprep.subr.bf16.mxu0 %v396
      %405 = vmatpush1.bf16.msra.mxu0 %v393
      %406 = vmatprep.subr.bf16.mxu0 %v377
      %407 = vmatpush1.bf16.msra.mxu0 %v376
      %408 = vmatprep.subr.bf16.mxu0 %v375
      %409 = vmatpush1.bf16.msra.mxu0 %v374
      %410 = vmatprep.subr.bf16.mxu0 %v373
      %411 = vmatpush1.bf16.msra.mxu0 %v372
      %412 = vmatprep.subr.bf16.mxu0 %v371
      %413 = vmatpush1.bf16.msra.mxu0 %v370
      %414 = vmatprep.subr.bf16.mxu0 0
      %415 = vmatpush2.bf16.msra.mxu0 0
      %416 = vmatprep.subr.bf16.mxu0 0
      %417 = vmatpush2.bf16.msra.mxu0 0
      %418 = vmatprep.subr.bf16.mxu0 0
      %419 = vmatpush2.bf16.msra.mxu0 0
      %420 = vmatprep.subr.bf16.mxu0 0
      %421 = vmatpush2.bf16.msra.mxu0 0
      %422 = vmatprep.subr.bf16.mxu0 0
      %423 = vmatpush2.bf16.msra.mxu0 0
      %424 = vmatprep.subr.bf16.mxu0 0
      %425 = vmatpush2.bf16.msra.mxu0 0
      %426 = vmatprep.subr.bf16.mxu0 0
      %427 = vmatpush2.bf16.msra.mxu0 0
      %428 = vmatprep.subr.bf16.mxu0 0
      %429 = vmatpush2.bf16.msra.mxu0 0
      %430 = vmatprep.mubr.bf16.mxu0 0
      %431 = vmatmul.mubr.bf16.gmra.mxu0 %v389
      %v432 = vpop.f32.mrf.mxu0
      %v433 = vadd.f32 %v385, %v432
      %v434 = vpop.f32.mrf.mxu0
      %v435 = vadd.f32 %v385, %v434
      %v436 = vpop.f32.mrf.mxu0
      %v437 = vpop.f32.mrf.mxu0
      %438 = vdwg.mxu0
      %v439 = vmax.f32 %v433, 0.0
      %v440 = vmax.f32 %v435, 0.0
      %443 = vrot.lane.b32.xlu0 %v439, 17
      %v444 = vpop.permute.xlu0 %443
      %445 = vrot.lane.b32.xlu0 %v440, 17
      %v446 = vpop.permute.xlu0 %445
      %v447 = vsel %vm272, %v267, %v444
      %v448 = vsel %vm272, %v444, %v446
      %v451 = vsel %vm261, %v447, 0.0
      %v452 = vsel %vm262, %v448, 0.0
      %453 = vrot.lane.b32.xlu0 %v439, 15
      %v454 = vpop.permute.xlu0 %453
      %455 = vrot.lane.b32.xlu0 %v440, 15
      %v456 = vpop.permute.xlu0 %455
      %v457 = vsel %vm289, %v284, %v454
      %v458 = vsel %vm289, %v454, %v456
      %v461 = vsel %vm281, %v457, 0.0
      %v462 = vsel %vm282, %v458, 0.0
      %463 = vrot.lane.b32.xlu0 %v439, 1
      %v464 = vpop.permute.xlu0 %463
      %465 = vrot.lane.b32.xlu0 %v440, 1
      %v466 = vpop.permute.xlu0 %465
      %v467 = vsel %vm302, %v297, %v464
      %v468 = vsel %vm302, %v464, %v466
      %v471 = vsel %vm261, %v467, 0.0
      %v472 = vsel %vm262, %v468, 0.0
      %473 = vrot.lane.b32.xlu0 %v439, 127
      %v474 = vpop.permute.xlu0 %473
      %475 = vrot.lane.b32.xlu0 %v440, 127
      %v476 = vpop.permute.xlu0 %475
      %v477 = vsel %vm315, %v474, %v476
      %v478 = vsel %vm315, %v476, %v314
      %v481 = vsel %vm281, %v477, 0.0
      %v482 = vsel %vm282, %v478, 0.0
      %483 = vrot.lane.b32.xlu0 %v439, 113
      %v484 = vpop.permute.xlu0 %483
      %485 = vrot.lane.b32.xlu0 %v440, 113
      %v486 = vpop.permute.xlu0 %485
      %v487 = vsel %vm328, %v484, %v486
      %v488 = vsel %vm328, %v486, %v327
      %v491 = vsel %vm261, %v487, 0.0
      %v492 = vsel %vm262, %v488, 0.0
      %493 = vrot.lane.b32.xlu0 %v439, 111
      %v494 = vpop.permute.xlu0 %493
      %495 = vrot.lane.b32.xlu0 %v440, 111
      %v496 = vpop.permute.xlu0 %495
      %v497 = vsel %vm341, %v494, %v496
      %v498 = vsel %vm341, %v496, %v340
      %v501 = vsel %vm281, %v497, 0.0
      %v502 = vsel %vm282, %v498, 0.0
      %503 = vrot.lane.b32.xlu0 %v439, 16
      %v504 = vpop.permute.xlu0 %503
      %505 = vrot.lane.b32.xlu0 %v440, 16
      %v506 = vpop.permute.xlu0 %505
      %v507 = vsel %vm354, %v349, %v504
      %v508 = vsel %vm354, %v504, %v506
      %511 = vrot.lane.b32.xlu0 %v439, 112
      %v512 = vpop.permute.xlu0 %511
      %513 = vrot.lane.b32.xlu0 %v440, 112
      %v514 = vpop.permute.xlu0 %513
      %v515 = vsel %vm365, %v512, %v514
      %v516 = vsel %vm365, %v514, %v364
      %v519 = vpack.c.bf16 %v507, %v451
      %v520 = vpack.c.bf16 %v508, %v452
      %v521 = vpack.c.bf16 %v471, %v461
      %v522 = vpack.c.bf16 %v472, %v462
      %v523 = vpack.c.bf16 %v481, %v439
      %v524 = vpack.c.bf16 %v482, %v440
      %v525 = vpack.c.bf16 %v515, %v491
      %v526 = vpack.c.bf16 %v516, %v492
      %v527 = vpack.c.bf16 %v501, %v501
      %v528 = vpack.c.bf16 %v502, %v502
      %v529 = vld [vmem:[%s3] sm:$0xf]
      %v530 = vld [vmem:[%s3 + $0x4] sm:$0xf]
      %v531 = vld [vmem:[%s4] sm:$0xff]
      %v532 = vld [vmem:[%s4 + $0x8] sm:$0xff]
      %534 = vset.pattern.permute.xlu0 0
      %535 = vperm.xlu0 %534, %v531
      %v536 = vpop.permute.xlu0 %535
      %539 = vset.pattern.permute.xlu0 0
      %540 = vperm.xlu0 %539, %v532
      %v541 = vpop.permute.xlu0 %540
      %v545 = vunpack.c.l.b16 %v529
      %v546 = vunpack.c.l.b16 %v530
      %v547 = vpack.c.b16 %v546, %v545
      %v549 = vsel %vm387, %v547, 0
      %v552 = vsel %vm391, %v527, 0
      %v555 = vsel %vm391, %v528, 0
      %557 = vmatprep.subr.bf16.mxu0 0
      %558 = vmatpush1.bf16.msra.mxu0 0
      %559 = vmatprep.subr.bf16.mxu0 0
      %560 = vmatpush1.bf16.msra.mxu0 0
      %561 = vmatprep.subr.bf16.mxu0 0
      %562 = vmatpush1.bf16.msra.mxu0 0
      %563 = vmatprep.subr.bf16.mxu0 %v555
      %564 = vmatpush1.bf16.msra.mxu0 %v552
      %565 = vmatprep.subr.bf16.mxu0 %v526
      %566 = vmatpush1.bf16.msra.mxu0 %v525
      %567 = vmatprep.subr.bf16.mxu0 %v524
      %568 = vmatpush1.bf16.msra.mxu0 %v523
      %569 = vmatprep.subr.bf16.mxu0 %v522
      %570 = vmatpush1.bf16.msra.mxu0 %v521
      %571 = vmatprep.subr.bf16.mxu0 %v520
      %572 = vmatpush1.bf16.msra.mxu0 %v519
      %573 = vmatprep.subr.bf16.mxu0 0
      %574 = vmatpush2.bf16.msra.mxu0 0
      %575 = vmatprep.subr.bf16.mxu0 0
      %576 = vmatpush2.bf16.msra.mxu0 0
      %577 = vmatprep.subr.bf16.mxu0 0
      %578 = vmatpush2.bf16.msra.mxu0 0
      %579 = vmatprep.subr.bf16.mxu0 0
      %580 = vmatpush2.bf16.msra.mxu0 0
      %581 = vmatprep.subr.bf16.mxu0 0
      %582 = vmatpush2.bf16.msra.mxu0 0
      %583 = vmatprep.subr.bf16.mxu0 0
      %584 = vmatpush2.bf16.msra.mxu0 0
      %585 = vmatprep.subr.bf16.mxu0 0
      %586 = vmatpush2.bf16.msra.mxu0 0
      %587 = vmatprep.subr.bf16.mxu0 0
      %588 = vmatpush2.bf16.msra.mxu0 0
      %589 = vmatprep.mubr.bf16.mxu0 0
      %590 = vmatmul.mubr.bf16.gmra.mxu0 %v549
      %v591 = vpop.f32.mrf.mxu0
      %v592 = vadd.f32 %v536, %v591
      %v593 = vpop.f32.mrf.mxu0
      %v594 = vadd.f32 %v536, %v593
      %v595 = vpop.f32.mrf.mxu0
      %v596 = vadd.f32 %v541, %v595
      %v597 = vpop.f32.mrf.mxu0
      %v598 = vadd.f32 %v541, %v597
      %599 = vdwg.mxu0
      %v600 = vmax.f32 %v592, 0.0
      %v601 = vmax.f32 %v594, 0.0
      %v602 = vmax.f32 %v596, 0.0
      %v603 = vmax.f32 %v598, 0.0
      %604 = vst [vmem:[%s224] sm:$0xff] %v600
      %605 = vst [vmem:[%s224 + $0x8] sm:$0xff] %v601
      %606 = vst [vmem:[%s224 + $0x10] sm:$0xff] %v602
      %607 = vst [vmem:[%s224 + $0x18] sm:$0xff] %v603
      %p608 = scmp.lt.s32.totalorder %s16, 1
      %s609 = scalar_select %p608, %s16, 1
      %s610 = smul.addr %s609, 4
      %s611 = smul.addr %s610, 8
      %s612 = scalar_lea.vmem %s5, %s611
      // Predicated region
      $region41: #{res_cutlayers_forward.1} parent=39 // pred_check
        %p613 = pneg %p144
      $region42: #{res_cutlayers_forward.1} parent=39 // pred_check_branch
        %615 = sbr.rel (%p613) target = $region44
      $region43: #{res_cutlayers_forward.1} parent=39 // pred_region
        _
      $region44: #{res_cutlayers_forward.1} parent=39 // pred_fallthru
        _
    $region40: #{res_cutlayers_forward.1} parent=5 // pred_fallthru
      _
    %p616 = scmp.le.s32.totalorder 2, %s11
    // Predicated region
    $region45: #{res_cutlayers_forward.1} parent=5 // pred_check
      %p617 = pneg %p616
    $region46: #{res_cutlayers_forward.1} parent=5 // pred_check_branch
      %619 = sbr.rel (%p617) target = $region48
    $region47: #{res_cutlayers_forward.1} parent=5 // pred_region
      %s620 = ssub.s32 %s11, 2
      // Predicated region
      $region49: #{res_cutlayers_forward.1} parent=47 // pred_check
        %p621 = pneg %p150
      $region50: #{res_cutlayers_forward.1} parent=47 // pred_check_branch
        %623 = sbr.rel (%p621) target = $region52
      $region51: #{res_cutlayers_forward.1} parent=47 // pred_region
        %p624 = scmp.lt.s32.totalorder %s17, 1
        %s625 = scalar_select %p624, %s17, 1
        %s626 = smul.addr %s625, 4
        %s627 = smul.addr %s626, 8
        %s628 = scalar_lea.vmem %s5, %s627
      $region52: #{res_cutlayers_forward.1} parent=47 // pred_fallthru
        _
    $region48: #{res_cutlayers_forward.1} parent=5 // pred_fallthru
      _
  $region6: #{res_cutlayers_forward.1} parent=0 // loop_footer
    %s15 = sadd.s32 1, %s11
  $region7: #{res_cutlayers_forward.1} parent=0 // loop_footer_branch
    %10 = sbr.rel target = $region3
  $region8: #{res_cutlayers_forward.1} parent=0 // loop_exit
    _

</llo_original>
